<compile_context>
chip_gen: v7x
topology: tpu7x:2x2x1
jax: 0.10.0
libtpu: 0.0.40
codegen_flags: <defaults>
</compile_context>

<pallas_src>
import functools

import jax
import jax.numpy as jnp
from jax import lax
from jax.experimental import pallas as pl
from jax.experimental.pallas import tpu as pltpu


def _round_up(v: int, m: int) -> int:
    return (v + m - 1) // m * m


def _layernorm_f32(x, gamma, beta, eps: float, e_valid: int, e_pad: int):
    """LayerNorm over the last axis of a (tm, E_pad) f32 tile; padded cols masked if needed."""
    if e_valid == e_pad:
        mean = jnp.mean(x, axis=-1, keepdims=True)
        diff = x - mean
        var = jnp.mean(diff * diff, axis=-1, keepdims=True)
    else:
        mask = (lax.broadcasted_iota(jnp.int32, x.shape, 1) < e_valid).astype(jnp.float32)
        inv_e = 1.0 / float(e_valid)
        xm = x * mask
        mean = jnp.sum(xm, axis=-1, keepdims=True) * inv_e
        diff = (xm - mean) * mask
        var = jnp.sum(diff * diff, axis=-1, keepdims=True) * inv_e
    xn = diff * lax.rsqrt(var + eps)
    return xn * gamma + beta


def _gelu_exact(h):
    # nn.GELU default (approximate='none'): 0.5 * h * (1 + erf(h / sqrt(2)))
    return 0.5 * h * (1.0 + lax.erf(h * 0.7071067811865476))


def _mlp_kernel_single(x_ref, g_ref, b_ref, w1_ref, b1_ref, w2_ref, b2_ref, o_ref,
                       *, eps: float, e_valid: int, e_pad: int):
    """Single H pass: whole MLP block for one row tile; weights resident across the call."""
    x = x_ref[...].astype(jnp.float32)
    xn = _layernorm_f32(x, g_ref[...].astype(jnp.float32), b_ref[...].astype(jnp.float32),
                        eps, e_valid, e_pad)

    w1 = w1_ref[...]                                                   # native dtype -> MXU
    h = jnp.dot(xn.astype(w1.dtype), w1, preferred_element_type=jnp.float32)
    h = h + b1_ref[...].astype(jnp.float32)
    h = _gelu_exact(h)
    # (Dropout -> identity in eval mode)

    w2 = w2_ref[...]
    out = jnp.dot(h.astype(w2.dtype), w2, preferred_element_type=jnp.float32)
    out = out + b2_ref[...].astype(jnp.float32)
    # (Dropout -> identity in eval mode)
    o_ref[...] = out.astype(o_ref.dtype)


def _mlp_kernel_tiled(x_ref, g_ref, b_ref, w1_ref, b1_ref, w2_ref, b2_ref, o_ref,
                      xn_ref, acc_ref, *, eps: float, e_valid: int, e_pad: int):
    """H-tiled variant: reduction over the hidden grid axis with an f32 accumulator."""
    j = pl.program_id(1)
    nj = pl.num_programs(1)

    @pl.when(j == 0)
    def _():
        x = x_ref[...].astype(jnp.float32)
        xn = _layernorm_f32(x, g_ref[...].astype(jnp.float32), b_ref[...].astype(jnp.float32),
                            eps, e_valid, e_pad)
        xn_ref[...] = xn.astype(xn_ref.dtype)      # cached once, already in the MXU dtype
        acc_ref[...] = jnp.zeros_like(acc_ref)

    w1 = w1_ref[...]
    h = jnp.dot(xn_ref[...], w1, preferred_element_type=jnp.float32)
    h = h + b1_ref[...].astype(jnp.float32)
    h = _gelu_exact(h)
    # (Dropout -> identity in eval mode)

    w2 = w2_ref[...]
    acc_ref[...] += jnp.dot(h.astype(w2.dtype), w2, preferred_element_type=jnp.float32)

    @pl.when(j == nj - 1)
    def _():
        # (Dropout -> identity in eval mode)
        o_ref[...] = (acc_ref[...] + b2_ref[...].astype(jnp.float32)).astype(o_ref.dtype)


def mlp_block(x, gamma, beta, w1, b1, w2, b2, *, eps=1e-5, tm=None, th=None):
    """x: [B, S, E]; w1: [E, H]; b1: [H]; w2: [H, E]; b2: [E]; gamma/beta: [E]."""
    B, S, E = x.shape
    H = w1.shape[1]
    M = B * S

    x_bytes = jnp.dtype(x.dtype).itemsize
    w_dtype = w1.dtype
    w_bytes = jnp.dtype(w_dtype).itemsize

    # ---- Generation-aware VMEM capacity (v5e/v6e: 128 MiB, v7x: 64 MiB) ----
    try:
        vmem_cap = int(pltpu.get_tpu_info().vmem_capacity_bytes)
        if vmem_cap <= 0:
            vmem_cap = 64 * (1 << 20)
    except Exception:
        vmem_cap = 64 * (1 << 20)

    # ---- Lane-dense channel padding; prefer 256-alignment when it doesn't over-pad ----
    def _chan_pad(n):
        p256 = _round_up(n, 256)
        p128 = _round_up(n, 128)
        return p256 if (p256 == p128 or (p256 - n) <= n // 2) else p128

    E_pad = _chan_pad(E)
    H_pad0 = _chan_pad(H)

    row_align = {4: 8, 2: 16, 1: 32}.get(x_bytes, 8)

    # ---- Structural choice: keep all of H in one step iff the weights fit the VMEM budget ----
    full_weight_bytes = 2 * (E_pad * H_pad0 + H_pad0 * E_pad) * w_bytes   # double-buffered
    single_pass = full_weight_bytes <= int(vmem_cap * 0.35)

    # ---- Row tile: large, but guarantee >= 2 row-grid steps when M allows (megacore) ----
    tm_cap = _round_up(M, row_align)
    if M >= 2 * row_align:
        tm_cap = min(tm_cap, _round_up(pl.cdiv(M, 2), row_align))
    if tm is None:
        tm = 512 if vmem_cap >= 96 * (1 << 20) else 256
    tm = max(row_align, min(_round_up(tm, row_align), tm_cap))

    # ---- Hidden tile ----
    if single_pass:
        th = H_pad0
    else:
        if th is None:
            per_th = 4 * E_pad * w_bytes          # double-buffered w1 + w2 columns per th
            th = max(128, (int(vmem_cap * 0.35) // per_th) // 128 * 128)
        th = min(_round_up(th, 128), H_pad0)
        # Minimize over-padding of H: keep the step count, balance the tile.
        n_h = pl.cdiv(H_pad0, th)
        th = _round_up(pl.cdiv(H_pad0, n_h), 128)
    H_pad = _round_up(H_pad0, th)

    # ---- VMEM estimate (incl. the (tm, th) f32 GELU intermediate + its cast copy) ----
    def _vmem_est(tm_):
        est = 2 * tm_ * E_pad * x_bytes                      # x tiles
        est += 2 * tm_ * E_pad * x_bytes                     # out tiles
        est += 2 * (E_pad * th + th * E_pad) * w_bytes       # weight tiles
        est += 2 * (th + 3 * E_pad) * max(w_bytes, 4)        # biases / gamma / beta
        est += tm_ * th * (4 + w_bytes)                      # h (f32) + cast for 2nd GEMM
        est += tm_ * E_pad * 4                               # LN temporaries
        if not single_pass:
            est += tm_ * E_pad * (w_bytes + 4)               # xn cache (MXU dtype) + f32 acc
        return est

    budget = int(vmem_cap * 0.80)
    while tm > row_align and _vmem_est(tm) > budget:
        tm = max(row_align, _round_up(tm // 2, row_align))
    M_pad = _round_up(M, tm)

    vmem_limit = int(min(max(_vmem_est(tm) + (8 << 20), 16 << 20), int(vmem_cap * 0.90)))

    # ---- Pad operands only when needed (skip extra HBM passes on aligned shapes) ----
    x2 = x.reshape(M, E)
    if M_pad != M or E_pad != E:
        x2 = jnp.pad(x2, ((0, M_pad - M), (0, E_pad - E)))
    g2 = gamma.reshape(1, E)
    be2 = beta.reshape(1, E)
    b1p = b1.reshape(1, H)
    b2p = b2.reshape(1, E)
    w1p, w2p = w1, w2
    if E_pad != E:
        g2 = jnp.pad(g2, ((0, 0), (0, E_pad - E)))
        be2 = jnp.pad(be2, ((0, 0), (0, E_pad - E)))
        b2p = jnp.pad(b2p, ((0, 0), (0, E_pad - E)))
    if H_pad != H:
        b1p = jnp.pad(b1p, ((0, 0), (0, H_pad - H)))
    if E_pad != E or H_pad != H:
        w1p = jnp.pad(w1p, ((0, E_pad - E), (0, H_pad - H)))
        w2p = jnp.pad(w2p, ((0, H_pad - H), (0, E_pad - E)))

    # ---- Cost estimate (accounts for weight re-streaming when the H axis stays tiled) ----
    n_row_tiles = M_pad // tm
    weight_reads = (E_pad * H_pad + H_pad * E_pad) * w_bytes * (1 if single_pass else n_row_tiles)
    cost = pl.CostEstimate(
        flops=4 * M * E * H,                      # two GEMMs, 2*M*E*H each
        transcendentals=M * H,                    # erf in GELU
        bytes_accessed=int(2 * M * E * x_bytes + weight_reads + (H + 3 * E) * max(w_bytes, 4)),
    )

    if single_pass:
        kernel = functools.partial(_mlp_kernel_single, eps=float(eps), e_valid=E, e_pad=E_pad)
        grid = (M_pad // tm,)
        in_specs = [
            pl.BlockSpec((tm, E_pad), lambda i: (i, 0)),     # x rows
            pl.BlockSpec((1, E_pad), lambda i: (0, 0)),      # gamma
            pl.BlockSpec((1, E_pad), lambda i: (0, 0)),      # beta
            pl.BlockSpec((E_pad, H_pad), lambda i: (0, 0)),  # w1 (resident)
            pl.BlockSpec((1, H_pad), lambda i: (0, 0)),      # b1
            pl.BlockSpec((H_pad, E_pad), lambda i: (0, 0)),  # w2 (resident)
            pl.BlockSpec((1, E_pad), lambda i: (0, 0)),      # b2
        ]
        out_specs = pl.BlockSpec((tm, E_pad), lambda i: (i, 0))
        scratch_shapes = []
        dims = ("parallel",)
    else:
        kernel = functools.partial(_mlp_kernel_tiled, eps=float(eps), e_valid=E, e_pad=E_pad)
        grid = (M_pad // tm, H_pad // th)
        in_specs = [
            pl.BlockSpec((tm, E_pad), lambda i, j: (i, 0)),   # x rows
            pl.BlockSpec((1, E_pad), lambda i, j: (0, 0)),    # gamma
            pl.BlockSpec((1, E_pad), lambda i, j: (0, 0)),    # beta
            pl.BlockSpec((E_pad, th), lambda i, j: (0, j)),   # w1 (H-tiled)
            pl.BlockSpec((1, th), lambda i, j: (0, j)),       # b1 (H-tiled)
            pl.BlockSpec((th, E_pad), lambda i, j: (j, 0)),   # w2 (H-tiled)
            pl.BlockSpec((1, E_pad), lambda i, j: (0, 0)),    # b2
        ]
        out_specs = pl.BlockSpec((tm, E_pad), lambda i, j: (i, 0))
        scratch_shapes = [
            pltpu.VMEM((tm, E_pad), w_dtype),                 # cached LN output (MXU dtype)
            pltpu.VMEM((tm, E_pad), jnp.float32),             # f32 accumulator
        ]
        dims = ("parallel", "arbitrary")

    out = pl.pallas_call(
        kernel,
        out_shape=jax.ShapeDtypeStruct((M_pad, E_pad), x.dtype),
        grid_spec=pltpu.PrefetchScalarGridSpec(
            num_scalar_prefetch=0,
            grid=grid,
            in_specs=in_specs,
            out_specs=out_specs,
            scratch_shapes=scratch_shapes,
        ),
        compiler_params=pltpu.CompilerParams(
            dimension_semantics=dims,
            vmem_limit_bytes=vmem_limit,
        ),
        cost_estimate=cost,
    )(x2, g2, be2, w1p, b1p, w2p, b2p)

    if M_pad != M or E_pad != E:
        out = out[:M, :E]
    return out.reshape(B, S, E)


def _reference(x, gamma, beta, w1, b1, w2, b2, eps=1e-5):
    xf = x.astype(jnp.float32)
    mean = jnp.mean(xf, axis=-1, keepdims=True)
    var = jnp.mean(jnp.square(xf - mean), axis=-1, keepdims=True)
    xn = (xf - mean) * lax.rsqrt(var + eps) * gamma + beta
    h = xn @ w1 + b1
    h = 0.5 * h * (1.0 + lax.erf(h / jnp.sqrt(2.0)))
    return (h @ w2 + b2).astype(x.dtype)


if __name__ == "__main__":
    # Small shapes consistent with the module: tokens [B, S, E], hidden H.
    B, S, E, H = 2, 8, 32, 128

    key = jax.random.PRNGKey(0)
    kx, kg, kb, kw1, kb1, kw2, kb2 = jax.random.split(key, 7)

    x = jax.random.normal(kx, (B, S, E), dtype=jnp.float32)
    # Deterministic synthetic parameters (not a checkpoint load).
    gamma = 1.0 + 0.02 * jax.random.normal(kg, (E,), dtype=jnp.float32)
    beta = 0.02 * jax.random.normal(kb, (E,), dtype=jnp.float32)
    w1 = jax.random.normal(kw1, (E, H), dtype=jnp.float32) / jnp.sqrt(E)
    b1 = 0.02 * jax.random.normal(kb1, (H,), dtype=jnp.float32)
    w2 = jax.random.normal(kw2, (H, E), dtype=jnp.float32) / jnp.sqrt(H)
    b2 = 0.02 * jax.random.normal(kb2, (E,), dtype=jnp.float32)

    out = mlp_block(x, gamma, beta, w1, b1, w2, b2)
    out = jax.block_until_ready(out)

    ref = _reference(x, gamma, beta, w1, b1, w2, b2)
    assert out.shape == (B, S, E)
    assert jnp.allclose(out, ref, atol=1e-4, rtol=1e-4), "mismatch vs reference"

    print("KERNEL_OK")
</pallas_src>

<mosaic_0001>
module attributes {stable_mosaic.version = 11 : i64} {
  func.func @_mlp_kernel_single(%arg0: i32, %arg1: memref<8x128xf32, #tpu.memory_space<vmem>>, %arg2: memref<1x128xf32, #tpu.memory_space<vmem>>, %arg3: memref<1x128xf32, #tpu.memory_space<vmem>>, %arg4: memref<128x128xf32, #tpu.memory_space<vmem>>, %arg5: memref<1x128xf32, #tpu.memory_space<vmem>>, %arg6: memref<128x128xf32, #tpu.memory_space<vmem>>, %arg7: memref<1x128xf32, #tpu.memory_space<vmem>>, %arg8: memref<8x128xf32, #tpu.memory_space<vmem>>) attributes {dimension_semantics = [#tpu.dimension_semantics<parallel>], iteration_bounds = array<i64: 2>, scalar_prefetch = 0 : i64, scratch_operands = 0 : i64, tpu.core_type = #tpu.core_type<tc>, window_params = [{transform_indices = @transform_0, window_bounds = array<i64: 8, 128>}, {pipeline_mode = #tpu.pipeline_mode<synchronous>, transform_indices = @transform_1, window_bounds = array<i64: 1, 128>}, {pipeline_mode = #tpu.pipeline_mode<synchronous>, transform_indices = @transform_2, window_bounds = array<i64: 1, 128>}, {pipeline_mode = #tpu.pipeline_mode<synchronous>, transform_indices = @transform_3, window_bounds = array<i64: 128, 128>}, {pipeline_mode = #tpu.pipeline_mode<synchronous>, transform_indices = @transform_4, window_bounds = array<i64: 1, 128>}, {pipeline_mode = #tpu.pipeline_mode<synchronous>, transform_indices = @transform_5, window_bounds = array<i64: 128, 128>}, {pipeline_mode = #tpu.pipeline_mode<synchronous>, transform_indices = @transform_6, window_bounds = array<i64: 1, 128>}, {transform_indices = @transform_7, window_bounds = array<i64: 8, 128>}]} {
    %c0 = arith.constant 0 : index
    %c0_0 = arith.constant 0 : index
    %0 = vector.load %arg1[%c0, %c0_0] : memref<8x128xf32, #tpu.memory_space<vmem>>, vector<8x128xf32>
    %c0_1 = arith.constant 0 : index
    %c0_2 = arith.constant 0 : index
    %1 = vector.load %arg2[%c0_1, %c0_2] : memref<1x128xf32, #tpu.memory_space<vmem>>, vector<1x128xf32>
    %c0_3 = arith.constant 0 : index
    %c0_4 = arith.constant 0 : index
    %2 = vector.load %arg3[%c0_3, %c0_4] : memref<1x128xf32, #tpu.memory_space<vmem>>, vector<1x128xf32>
    %3 = tpu.iota {dimensions = array<i32: 1>} : vector<8x128xi32>
    %c32_i32 = arith.constant 32 : i32
    %4 = vector.broadcast %c32_i32 : i32 to vector<8x128xi32>
    %5 = arith.cmpi slt, %3, %4 : vector<8x128xi32>
    %6 = arith.extui %5 : vector<8x128xi1> to vector<8x128xi32>
    %7 = arith.sitofp %6 : vector<8x128xi32> to vector<8x128xf32>
    %8 = arith.mulf %0, %7 : vector<8x128xf32>
    %cst = arith.constant dense<0.000000e+00> : vector<8xf32>
    %9 = vector.multi_reduction <add>, %8, %cst [1] : vector<8x128xf32> to vector<8xf32>
    %10 = vector.shape_cast %9 : vector<8xf32> to vector<8x1xf32>
    %cst_5 = arith.constant 3.125000e-02 : f32
    %11 = vector.broadcast %cst_5 : f32 to vector<8x1xf32>
    %12 = arith.mulf %10, %11 : vector<8x1xf32>
    %13 = vector.broadcast %12 : vector<8x1xf32> to vector<8x128xf32>
    %14 = arith.subf %8, %13 : vector<8x128xf32>
    %15 = arith.mulf %14, %7 : vector<8x128xf32>
    %16 = arith.mulf %15, %15 : vector<8x128xf32>
    %cst_6 = arith.constant dense<0.000000e+00> : vector<8xf32>
    %17 = vector.multi_reduction <add>, %16, %cst_6 [1] : vector<8x128xf32> to vector<8xf32>
    %18 = vector.shape_cast %17 : vector<8xf32> to vector<8x1xf32>
    %cst_7 = arith.constant 3.125000e-02 : f32
    %19 = vector.broadcast %cst_7 : f32 to vector<8x1xf32>
    %20 = arith.mulf %18, %19 : vector<8x1xf32>
    %cst_8 = arith.constant 9.99999974E-6 : f32
    %21 = vector.broadcast %cst_8 : f32 to vector<8x1xf32>
    %22 = arith.addf %20, %21 : vector<8x1xf32>
    %23 = math.rsqrt %22 : vector<8x1xf32>
    %24 = vector.broadcast %23 : vector<8x1xf32> to vector<8x128xf32>
    %25 = arith.mulf %15, %24 : vector<8x128xf32>
    %26 = vector.broadcast %1 : vector<1x128xf32> to vector<8x128xf32>
    %27 = arith.mulf %25, %26 : vector<8x128xf32>
    %28 = vector.broadcast %2 : vector<1x128xf32> to vector<8x128xf32>
    %29 = arith.addf %27, %28 : vector<8x128xf32>
    %c0_9 = arith.constant 0 : index
    %c0_10 = arith.constant 0 : index
    %30 = vector.load %arg4[%c0_9, %c0_10] : memref<128x128xf32, #tpu.memory_space<vmem>>, vector<128x128xf32>
    %cst_11 = arith.constant dense<0.000000e+00> : vector<8x128xf32>
    %31 = tpu.matmul %29, %30, %cst_11 {dimension_numbers = #tpu.dot_dimension_numbers<[1], [0], [0], [1], [0, 0, 1, 1], [], []>} : vector<8x128xf32>, vector<128x128xf32>, vector<8x128xf32> -> vector<8x128xf32>
    %c0_12 = arith.constant 0 : index
    %c0_13 = arith.constant 0 : index
    %32 = vector.load %arg5[%c0_12, %c0_13] : memref<1x128xf32, #tpu.memory_space<vmem>>, vector<1x128xf32>
    %33 = vector.broadcast %32 : vector<1x128xf32> to vector<8x128xf32>
    %34 = arith.addf %31, %33 : vector<8x128xf32>
    %cst_14 = arith.constant 5.000000e-01 : f32
    %35 = vector.broadcast %cst_14 : f32 to vector<8x128xf32>
    %36 = arith.mulf %35, %34 : vector<8x128xf32>
    %cst_15 = arith.constant 0.707106769 : f32
    %37 = vector.broadcast %cst_15 : f32 to vector<8x128xf32>
    %38 = arith.mulf %34, %37 : vector<8x128xf32>
    %39 = math.erf %38 : vector<8x128xf32>
    %cst_16 = arith.constant 1.000000e+00 : f32
    %40 = vector.broadcast %cst_16 : f32 to vector<8x128xf32>
    %41 = arith.addf %40, %39 : vector<8x128xf32>
    %42 = arith.mulf %36, %41 : vector<8x128xf32>
    %c0_17 = arith.constant 0 : index
    %c0_18 = arith.constant 0 : index
    %43 = vector.load %arg6[%c0_17, %c0_18] : memref<128x128xf32, #tpu.memory_space<vmem>>, vector<128x128xf32>
    %cst_19 = arith.constant dense<0.000000e+00> : vector<8x128xf32>
    %44 = tpu.matmul %42, %43, %cst_19 {dimension_numbers = #tpu.dot_dimension_numbers<[1], [0], [0], [1], [0, 0, 1, 1], [], []>} : vector<8x128xf32>, vector<128x128xf32>, vector<8x128xf32> -> vector<8x128xf32>
    %c0_20 = arith.constant 0 : index
    %c0_21 = arith.constant 0 : index
    %45 = vector.load %arg7[%c0_20, %c0_21] : memref<1x128xf32, #tpu.memory_space<vmem>>, vector<1x128xf32>
    %46 = vector.broadcast %45 : vector<1x128xf32> to vector<8x128xf32>
    %47 = arith.addf %44, %46 : vector<8x128xf32>
    %c0_22 = arith.constant 0 : index
    %c0_23 = arith.constant 0 : index
    %48 = vector.load %arg8[%c0_22, %c0_23] : memref<8x128xf32, #tpu.memory_space<vmem>>, vector<8x128xf32>
    tpu.vector_store %arg8[%c0_22, %c0_23], %47 {strides = array<i32>} : memref<8x128xf32, #tpu.memory_space<vmem>>, vector<8x128xf32>,
    return
  }
  func.func @transform_0(%arg0: i32) -> (i32, i32) {
    %c0_i32 = arith.constant 0 : i32
    %c0_i32_0 = arith.constant 0 : i32
    return %arg0, %c0_i32 : i32, i32
  }
  func.func @transform_1(%arg0: i32) -> (i32, i32) {
    %c0_i32 = arith.constant 0 : i32
    %c0_i32_0 = arith.constant 0 : i32
    %c0_i32_1 = arith.constant 0 : i32
    return %c0_i32, %c0_i32_0 : i32, i32
  }
  func.func @transform_2(%arg0: i32) -> (i32, i32) {
    %c0_i32 = arith.constant 0 : i32
    %c0_i32_0 = arith.constant 0 : i32
    %c0_i32_1 = arith.constant 0 : i32
    return %c0_i32, %c0_i32_0 : i32, i32
  }
  func.func @transform_3(%arg0: i32) -> (i32, i32) {
    %c0_i32 = arith.constant 0 : i32
    %c0_i32_0 = arith.constant 0 : i32
    %c0_i32_1 = arith.constant 0 : i32
    return %c0_i32, %c0_i32_0 : i32, i32
  }
  func.func @transform_4(%arg0: i32) -> (i32, i32) {
    %c0_i32 = arith.constant 0 : i32
    %c0_i32_0 = arith.constant 0 : i32
    %c0_i32_1 = arith.constant 0 : i32
    return %c0_i32, %c0_i32_0 : i32, i32
  }
  func.func @transform_5(%arg0: i32) -> (i32, i32) {
    %c0_i32 = arith.constant 0 : i32
    %c0_i32_0 = arith.constant 0 : i32
    %c0_i32_1 = arith.constant 0 : i32
    return %c0_i32, %c0_i32_0 : i32, i32
  }
  func.func @transform_6(%arg0: i32) -> (i32, i32) {
    %c0_i32 = arith.constant 0 : i32
    %c0_i32_0 = arith.constant 0 : i32
    %c0_i32_1 = arith.constant 0 : i32
    return %c0_i32, %c0_i32_0 : i32, i32
  }
  func.func @transform_7(%arg0: i32) -> (i32, i32) {
    %c0_i32 = arith.constant 0 : i32
    %c0_i32_0 = arith.constant 0 : i32
    return %arg0, %c0_i32 : i32, i32
  }
}

</mosaic_0001>

<llo_original>
// kernel: tpu_custom_call.1
$region0: #{tpu_custom_call.1}
  #allocation0 [shape = 'u32[]', space=smem, size = 0x4, offset = 0x4, fixed_abs, tag = 'smem constant byte address 0x4 - core index']
  #allocation1 [shape = 'u32[144,128]{1,0:T(1,128)}', space=vmem, size = 0x12000, scoped, tag = 'internal scratch']
  %s0 = inlined_call_operand.hbm [shape: f32[16,128], index: 0, kind: input, shape index: {}]
  %s1 = inlined_call_operand.vmem [shape: f32[1,128], index: 1, kind: input, shape index: {}]
  %s2 = inlined_call_operand.vmem [shape: f32[1,128], index: 2, kind: input, shape index: {}]
  %s3 = inlined_call_operand.hbm [shape: f32[128,128], index: 3, kind: input, shape index: {}]
  %s4 = inlined_call_operand.vmem [shape: f32[1,128], index: 4, kind: input, shape index: {}]
  %s5 = inlined_call_operand.hbm [shape: f32[128,128], index: 5, kind: input, shape index: {}]
  %s6 = inlined_call_operand.vmem [shape: f32[1,128], index: 6, kind: input, shape index: {}]
  %s7 = inlined_call_operand.hbm [shape: f32[16,128], index: 7, kind: output, shape index: {}]
  %s8 = sld [smem:[#allocation0]]
  $region73: #{tpu_custom_call.1} parent=0
    _
  %s10 = ssub.s32 1, %s8
  %s11 = scalar_select 0, %s10, %s8
  $region1: #{tpu_custom_call.1} parent=0
    #allocation2 [shape = 'u8[8192]{0}', space=vmem, size = 0x2000, scoped, tag = 'input window, operand 0']
    #allocation3 [shape = 's32[2]{0}', space=sflag, size = 0x8, scoped, tag = 'scoped memory for tpu_custom_call.1']
    #allocation4 [shape = 's32[2]{0}', space=sflag, size = 0x8, scoped, tag = 'scoped memory for tpu_custom_call.1']
    #allocation5 [shape = 'u8[65536]{0}', space=vmem, size = 0x10000, scoped, tag = 'input window, operand 3, single buffered']
    #allocation6 [shape = 's32[1]{0}', space=sflag, size = 0x4, scoped, tag = 'scoped memory for tpu_custom_call.1']
    #allocation7 [shape = 'u8[65536]{0}', space=vmem, size = 0x10000, scoped, tag = 'input window, operand 5, single buffered']
    #allocation8 [shape = 'u8[8192]{0}', space=vmem, size = 0x2000, scoped, tag = 'output window, operand 0']
    %12 = vsyncpa [#allocation3], 0
    %s13 = scalar_lea.sflag [#allocation3], 1
    %14 = vsyncpa %s13, 0
    %15 = vsyncpa [#allocation6], 0
    %16 = vsyncpa [#allocation4], 0
    %s17 = scalar_lea.sflag [#allocation4], 1
    %18 = vsyncpa %s17, 0
    loop: start=0, step=1, limit=4
    $region2: #{tpu_custom_call.1} parent=1 // loop_pre_header
      _
    $region3: #{tpu_custom_call.1} parent=1 // loop_header
      %s20 = sphi 0, %s24
      %p21 = scmp.ge.s32.totalorder %s20, 4
      %s30 = sphi 0, %s32
      %s33 = sphi 0, %s30
      %s34 = sphi 0, %s33
      %s50 = sphi 0, %s34
      %s54 = sphi 0, %s54
      %s56 = sphi 0, %s54
      %s57 = sphi 0, %s56
      %s71 = sphi 0, %s57
      %s75 = sphi 0, %s75
      %s77 = sphi 0, %s75
      %s78 = sphi 0, %s77
      %s92 = sphi 0, %s78
      %s96 = sphi 0, %s96
      %s98 = sphi 0, %s96
      %s99 = sphi 0, %s98
      %s113 = sphi 0, %s99
      %s117 = sphi 0, %s117
      %s119 = sphi 0, %s117
      %s120 = sphi 0, %s119
      %s134 = sphi 0, %s120
      %s138 = sphi 0, %s138
      %s140 = sphi 0, %s138
      %s141 = sphi 0, %s140
      %s155 = sphi 0, %s141
      %s159 = sphi 0, %s159
      %s161 = sphi 0, %s159
      %s162 = sphi 0, %s161
      %s176 = sphi 0, %s162
      %s182 = sphi 0, %s184
      %s185 = sphi 0, %s182
      %s186 = sphi 0, %s185
      %s202 = sphi 0, %s186
    $region4: #{tpu_custom_call.1} parent=1 // loop_header_branch
      %23 = sbr.rel (%p21) target = $region8
    $region5: #{tpu_custom_call.1} parent=1 // loop_body
      %s25 = ssub.s32 %s20, 1
      %s26 = ssub.s32 %s20, 2
      %s27 = sadd.s32 %s20, 1
      %s28 = ssub.s32 %s20, %s27
      %p29 = scmp.eq.s32.totalorder %s28, 0
      %s31 = sadd.s32 %s30, 1
      %s32 = scalar_select %p29, %s30, %s31
      %p35 = pneg %p29
      %p36 = scmp.eq.s32.totalorder %s20, 1
      %p37 = por %p35, %p36
      %p38 = scmp.ne.s32.totalorder %s30, %s33
      %p39 = scmp.eq.s32.totalorder %s20, 0
      %p40 = por %p38, %p39
      %p41 = scmp.ne.s32.totalorder %s30, %s33
      %p42 = scmp.eq.s32.totalorder %s25, 1
      %p43 = por %p41, %p42
      %p44 = scmp.ne.s32.totalorder %s33, %s34
      %p45 = scmp.eq.s32.totalorder %s25, 0
      %p46 = por %p44, %p45
      %p47 = scmp.ne.s32.totalorder %s33, %s34
      %p48 = scmp.eq.s32.totalorder %s26, 1
      %p49 = por %p47, %p48
      %p51 = scmp.ne.s32.totalorder %s34, %s50
      %p52 = scmp.eq.s32.totalorder %s26, 0
      %p53 = por %p51, %p52
      %s55 = sadd.s32 %s54, 1
      %p58 = scmp.eq.s32.totalorder %s20, 1
      %p59 = scmp.ne.s32.totalorder %s54, %s56
      %p60 = scmp.eq.s32.totalorder %s20, 0
      %p61 = por %p59, %p60
      %p62 = scmp.ne.s32.totalorder %s54, %s56
      %p63 = scmp.eq.s32.totalorder %s25, 1
      %p64 = por %p62, %p63
      %p65 = scmp.ne.s32.totalorder %s56, %s57
      %p66 = scmp.eq.s32.totalorder %s25, 0
      %p67 = por %p65, %p66
      %p68 = scmp.ne.s32.totalorder %s56, %s57
      %p69 = scmp.eq.s32.totalorder %s26, 1
      %p70 = por %p68, %p69
      %p72 = scmp.ne.s32.totalorder %s57, %s71
      %p73 = scmp.eq.s32.totalorder %s26, 0
      %p74 = por %p72, %p73
      %s76 = sadd.s32 %s75, 1
      %p79 = scmp.eq.s32.totalorder %s20, 1
      %p80 = scmp.ne.s32.totalorder %s75, %s77
      %p81 = scmp.eq.s32.totalorder %s20, 0
      %p82 = por %p80, %p81
      %p83 = scmp.ne.s32.totalorder %s75, %s77
      %p84 = scmp.eq.s32.totalorder %s25, 1
      %p85 = por %p83, %p84
      %p86 = scmp.ne.s32.totalorder %s77, %s78
      %p87 = scmp.eq.s32.totalorder %s25, 0
      %p88 = por %p86, %p87
      %p89 = scmp.ne.s32.totalorder %s77, %s78
      %p90 = scmp.eq.s32.totalorder %s26, 1
      %p91 = por %p89, %p90
      %p93 = scmp.ne.s32.totalorder %s78, %s92
      %p94 = scmp.eq.s32.totalorder %s26, 0
      %p95 = por %p93, %p94
      %s97 = sadd.s32 %s96, 1
      %p100 = scmp.eq.s32.totalorder %s20, 1
      %p101 = scmp.ne.s32.totalorder %s96, %s98
      %p102 = scmp.eq.s32.totalorder %s20, 0
      %p103 = por %p101, %p102
      %p104 = scmp.ne.s32.totalorder %s96, %s98
      %p105 = scmp.eq.s32.totalorder %s25, 1
      %p106 = por %p104, %p105
      %p107 = scmp.ne.s32.totalorder %s98, %s99
      %p108 = scmp.eq.s32.totalorder %s25, 0
      %p109 = por %p107, %p108
      %p110 = scmp.ne.s32.totalorder %s98, %s99
      %p111 = scmp.eq.s32.totalorder %s26, 1
      %p112 = por %p110, %p111
      %p114 = scmp.ne.s32.totalorder %s99, %s113
      %p115 = scmp.eq.s32.totalorder %s26, 0
      %p116 = por %p114, %p115
      %s118 = sadd.s32 %s117, 1
      %p121 = scmp.eq.s32.totalorder %s20, 1
      %p122 = scmp.ne.s32.totalorder %s117, %s119
      %p123 = scmp.eq.s32.totalorder %s20, 0
      %p124 = por %p122, %p123
      %p125 = scmp.ne.s32.totalorder %s117, %s119
      %p126 = scmp.eq.s32.totalorder %s25, 1
      %p127 = por %p125, %p126
      %p128 = scmp.ne.s32.totalorder %s119, %s120
      %p129 = scmp.eq.s32.totalorder %s25, 0
      %p130 = por %p128, %p129
      %p131 = scmp.ne.s32.totalorder %s119, %s120
      %p132 = scmp.eq.s32.totalorder %s26, 1
      %p133 = por %p131, %p132
      %p135 = scmp.ne.s32.totalorder %s120, %s134
      %p136 = scmp.eq.s32.totalorder %s26, 0
      %p137 = por %p135, %p136
      %s139 = sadd.s32 %s138, 1
      %p142 = scmp.eq.s32.totalorder %s20, 1
      %p143 = scmp.ne.s32.totalorder %s138, %s140
      %p144 = scmp.eq.s32.totalorder %s20, 0
      %p145 = por %p143, %p144
      %p146 = scmp.ne.s32.totalorder %s138, %s140
      %p147 = scmp.eq.s32.totalorder %s25, 1
      %p148 = por %p146, %p147
      %p149 = scmp.ne.s32.totalorder %s140, %s141
      %p150 = scmp.eq.s32.totalorder %s25, 0
      %p151 = por %p149, %p150
      %p152 = scmp.ne.s32.totalorder %s140, %s141
      %p153 = scmp.eq.s32.totalorder %s26, 1
      %p154 = por %p152, %p153
      %p156 = scmp.ne.s32.totalorder %s141, %s155
      %p157 = scmp.eq.s32.totalorder %s26, 0
      %p158 = por %p156, %p157
      %s160 = sadd.s32 %s159, 1
      %p163 = scmp.eq.s32.totalorder %s20, 1
      %p164 = scmp.ne.s32.totalorder %s159, %s161
      %p165 = scmp.eq.s32.totalorder %s20, 0
      %p166 = por %p164, %p165
      %p167 = scmp.ne.s32.totalorder %s159, %s161
      %p168 = scmp.eq.s32.totalorder %s25, 1
      %p169 = por %p167, %p168
      %p170 = scmp.ne.s32.totalorder %s161, %s162
      %p171 = scmp.eq.s32.totalorder %s25, 0
      %p172 = por %p170, %p171
      %p173 = scmp.ne.s32.totalorder %s161, %s162
      %p174 = scmp.eq.s32.totalorder %s26, 1
      %p175 = por %p173, %p174
      %p177 = scmp.ne.s32.totalorder %s162, %s176
      %p178 = scmp.eq.s32.totalorder %s26, 0
      %p179 = por %p177, %p178
      %s180 = ssub.s32 %s20, %s27
      %p181 = scmp.eq.s32.totalorder %s180, 0
      %s183 = sadd.s32 %s182, 1
      %s184 = scalar_select %p181, %s182, %s183
      %p187 = pneg %p181
      %p188 = scmp.eq.s32.totalorder %s20, 1
      %p189 = por %p187, %p188
      %p190 = scmp.ne.s32.totalorder %s182, %s185
      %p191 = scmp.eq.s32.totalorder %s20, 0
      %p192 = por %p190, %p191
      %p193 = scmp.ne.s32.totalorder %s182, %s185
      %p194 = scmp.eq.s32.totalorder %s25, 1
      %p195 = por %p193, %p194
      %p196 = scmp.ne.s32.totalorder %s185, %s186
      %p197 = scmp.eq.s32.totalorder %s25, 0
      %p198 = por %p196, %p197
      %p199 = scmp.ne.s32.totalorder %s185, %s186
      %p200 = scmp.eq.s32.totalorder %s26, 1
      %p201 = por %p199, %p200
      %p203 = scmp.ne.s32.totalorder %s186, %s202
      %p204 = scmp.eq.s32.totalorder %s26, 0
      %p205 = por %p203, %p204
      %p206 = scmp.le.s32.totalorder 1, %s20
      %p207 = scmp.lt.s32.totalorder %s20, 3
      %p208 = pnand %p206, %p207
      %p209 = pneg %p208
      // Predicated region
      $region9: #{tpu_custom_call.1} parent=5 // pred_check
        _
      $region10: #{tpu_custom_call.1} parent=5 // pred_check_branch
        %211 = sbr.rel (%p208) target = $region12
      $region11: #{tpu_custom_call.1} parent=5 // pred_region
        %s212 = ssub.s32 %s20, 1
        // Predicated region
        $region13: #{tpu_custom_call.1} parent=11 // pred_check
          %p213 = pneg %p67
        $region14: #{tpu_custom_call.1} parent=11 // pred_check_branch
          %215 = sbr.rel (%p213) target = $region16
        $region15: #{tpu_custom_call.1} parent=11 // pred_region
          _
        $region16: #{tpu_custom_call.1} parent=11 // pred_fallthru
          _
        // Predicated region
        $region17: #{tpu_custom_call.1} parent=11 // pred_check
          %p216 = pneg %p88
        $region18: #{tpu_custom_call.1} parent=11 // pred_check_branch
          %218 = sbr.rel (%p216) target = $region20
        $region19: #{tpu_custom_call.1} parent=11 // pred_region
          _
        $region20: #{tpu_custom_call.1} parent=11 // pred_fallthru
          _
        // Predicated region
        $region21: #{tpu_custom_call.1} parent=11 // pred_check
          %p219 = pneg %p109
        $region22: #{tpu_custom_call.1} parent=11 // pred_check_branch
          %221 = sbr.rel (%p219) target = $region24
        $region23: #{tpu_custom_call.1} parent=11 // pred_region
          %s223 = ssub.s32 2048, 2048
          %224 = vsyncadd [#allocation6], %s223
          %s225 = sshll.u32 [#allocation5], 4
          %s226 = int_to_ptr.vmem [resolvable:$true] %s225
          %231 = dma.hbm_to_vmem [thread:$0]  %s3, 2048, %s226, [#allocation6], 128, 128, 8
        $region24: #{tpu_custom_call.1} parent=11 // pred_fallthru
          _
        // Predicated region
        $region25: #{tpu_custom_call.1} parent=11 // pred_check
          %p232 = pneg %p130
        $region26: #{tpu_custom_call.1} parent=11 // pred_check_branch
          %234 = sbr.rel (%p232) target = $region28
        $region27: #{tpu_custom_call.1} parent=11 // pred_region
          _
        $region28: #{tpu_custom_call.1} parent=11 // pred_fallthru
          _
        // Predicated region
        $region29: #{tpu_custom_call.1} parent=11 // pred_check
          %p235 = pneg %p151
        $region30: #{tpu_custom_call.1} parent=11 // pred_check_branch
          %237 = sbr.rel (%p235) target = $region32
        $region31: #{tpu_custom_call.1} parent=11 // pred_region
          %s239 = ssub.s32 2048, 2048
          %240 = vsyncadd [#allocation6], %s239
          %s241 = sshll.u32 [#allocation7], 4
          %s242 = int_to_ptr.vmem [resolvable:$true] %s241
          %247 = dma.hbm_to_vmem [thread:$0]  %s5, 2048, %s242, [#allocation6], 128, 128, 8
        $region32: #{tpu_custom_call.1} parent=11 // pred_fallthru
          _
        // Predicated region
        $region33: #{tpu_custom_call.1} parent=11 // pred_check
          %p248 = pneg %p172
        $region34: #{tpu_custom_call.1} parent=11 // pred_check_branch
          %250 = sbr.rel (%p248) target = $region36
        $region35: #{tpu_custom_call.1} parent=11 // pred_region
          _
        $region36: #{tpu_custom_call.1} parent=11 // pred_fallthru
          _
      $region12: #{tpu_custom_call.1} parent=5 // pred_fallthru
        _
      %p251 = scmp.lt.s32.totalorder %s20, 2
      // Predicated region
      $region37: #{tpu_custom_call.1} parent=5 // pred_check
        %p252 = pneg %p251
      $region38: #{tpu_custom_call.1} parent=5 // pred_check_branch
        %254 = sbr.rel (%p252) target = $region40
      $region39: #{tpu_custom_call.1} parent=5 // pred_region
        // Predicated region
        $region41: #{tpu_custom_call.1} parent=39 // pred_check
          %p255 = pneg %p40
        $region42: #{tpu_custom_call.1} parent=39 // pred_check_branch
          %257 = sbr.rel (%p255) target = $region44
        $region43: #{tpu_custom_call.1} parent=39 // pred_region
          %s258 = sand.u32 %s30, 1
          %s259 = scalar_lea.sflag [#allocation3], %s258
          %s260 = sand.u32 %s30, 1
          %s261 = smul.addr %s260, 8
          %s262 = scalar_lea.vmem [#allocation2], %s261
          %s264 = ssub.s32 128, 128
          %265 = vsyncadd %s259, %s264
          %s266 = smul.addr %s20, 128
          %s267 = scalar_lea.hbm %s0, %s266
          %s269 = sshll.u32 %s262, 4
          %s270 = int_to_ptr.vmem [resolvable:$true] %s269
          %272 = dma.hbm_to_vmem [thread:$0]  %s267, 128, %s270, %s259
        $region44: #{tpu_custom_call.1} parent=39 // pred_fallthru
          _
      $region40: #{tpu_custom_call.1} parent=5 // pred_fallthru
        _
      %p273 = scmp.le.s32.totalorder 1, %s20
      %p274 = scmp.lt.s32.totalorder %s20, 3
      %p275 = pnand %p273, %p274
      %p276 = pneg %p275
      // Predicated region
      $region45: #{tpu_custom_call.1} parent=5 // pred_check
        _
      $region46: #{tpu_custom_call.1} parent=5 // pred_check_branch
        %278 = sbr.rel (%p275) target = $region48
      $region47: #{tpu_custom_call.1} parent=5 // pred_region
        %s279 = ssub.s32 %s20, 1
        %s280 = sand.u32 %s33, 1
        %s281 = scalar_lea.sflag [#allocation3], %s280
        %s282 = sand.u32 %s33, 1
        %s283 = smul.addr %s282, 8
        %s284 = scalar_lea.vmem [#allocation2], %s283
        // Predicated region
        $region49: #{tpu_custom_call.1} parent=47 // pred_check
          %p285 = pneg %p46
        $region50: #{tpu_custom_call.1} parent=47 // pred_check_branch
          %287 = sbr.rel (%p285) target = $region52
        $region51: #{tpu_custom_call.1} parent=47 // pred_region
          %288 = dma.done %s281, 128
        $region52: #{tpu_custom_call.1} parent=47 // pred_fallthru
          _
        // Predicated region
        $region53: #{tpu_custom_call.1} parent=47 // pred_check
          %p289 = pneg %p109
        $region54: #{tpu_custom_call.1} parent=47 // pred_check_branch
          %291 = sbr.rel (%p289) target = $region56
        $region55: #{tpu_custom_call.1} parent=47 // pred_region
          %292 = dma.done [#allocation6], 2048
        $region56: #{tpu_custom_call.1} parent=47 // pred_fallthru
          _
        // Predicated region
        $region57: #{tpu_custom_call.1} parent=47 // pred_check
          %p293 = pneg %p151
        $region58: #{tpu_custom_call.1} parent=47 // pred_check_branch
          %295 = sbr.rel (%p293) target = $region60
        $region59: #{tpu_custom_call.1} parent=47 // pred_region
          %296 = dma.done [#allocation6], 2048
        $region60: #{tpu_custom_call.1} parent=47 // pred_fallthru
          _
        %s297 = sand.u32 %s33, 1
        %s298 = scalar_lea.sflag [#allocation3], %s297
        %s299 = sand.u32 %s33, 1
        %s300 = smul.addr %s299, 8
        %s301 = scalar_lea.vmem [#allocation2], %s300
        %p302 = pneg %p46
        %p303 = pneg %p43
        %p304 = pneg %p67
        %p305 = pneg %p64
        %p306 = pneg %p88
        %p307 = pneg %p85
        %p308 = pneg %p109
        %p309 = pneg %p106
        %p310 = pneg %p130
        %p311 = pneg %p127
        %p312 = pneg %p151
        %p313 = pneg %p148
        %p314 = pneg %p172
        %p315 = pneg %p169
        %p316 = pneg %p198
        %p317 = pneg %p195
        %s318 = sand.u32 %s185, 1
        %s319 = scalar_lea.sflag [#allocation4], %s318
        %s320 = sand.u32 %s185, 1
        %s321 = smul.addr %s320, 8
        %s322 = scalar_lea.vmem [#allocation8], %s321
        %v323 = vld [vmem:[%s284] sm:$0xff]
        %v324 = vld [vmem:[%s1] sm:$0x1]
        %v325 = vld [vmem:[%s2] sm:$0x1]
        %v326 = vlaneseq
        %v327 = vand.u32 %v326, 127
        %vm328 = vcmp.lt.s32.totalorder %v327, 32
        %v329 = vsel %vm328, 1, 0
        %v330 = vcvt.s32.f32 %v329
        %v331 = vmul.f32 %v323, %v330
        %332 = vadd.xlane.f32.xlu0 %v331
        %v333 = vpop.xlane.xlu0 %332
        %v334 = vmul.f32 %v333, 0.03125
        %v335 = vsub.f32 %v331, %v334
        %v336 = vmul.f32 %v335, %v330
        %v337 = vmul.f32 %v336, %v336
        %338 = vadd.xlane.f32.xlu0 %v337
        %v339 = vpop.xlane.xlu0 %338
        %v340 = vmul.f32 %v339, 0.03125
        %v341 = vadd.f32 %v340, 1e-05
        %v342 = vrsqrt.pop %v341
        %v343 = vmul.f32 %v336, %v342
        %v345 = vlaneseq
        %v346 = vshrl.u32 %v345, 7
        %v347 = vsub.s32 0, %v346
        %v348 = vrot.slane %v324, %v347
        %v350 = vmul.f32 %v343, %v348
        %v352 = vlaneseq
        %v353 = vshrl.u32 %v352, 7
        %v354 = vsub.s32 0, %v353
        %v355 = vrot.slane %v325, %v354
        %v357 = vadd.f32 %v350, %v355
        %v358 = vld [vmem:[#allocation5] sm:$0xff]
        %v359 = vld [vmem:[#allocation5 + $0x8] sm:$0xff]
        %v360 = vld [vmem:[#allocation5 + $0x10] sm:$0xff]
        %v361 = vld [vmem:[#allocation5 + $0x18] sm:$0xff]
        %v362 = vld [vmem:[#allocation5 + $0x20] sm:$0xff]
        %v363 = vld [vmem:[#allocation5 + $0x28] sm:$0xff]
        %v364 = vld [vmem:[#allocation5 + $0x30] sm:$0xff]
        %v365 = vld [vmem:[#allocation5 + $0x38] sm:$0xff]
        %v366 = vld [vmem:[#allocation5 + $0x40] sm:$0xff]
        %v367 = vld [vmem:[#allocation5 + $0x48] sm:$0xff]
        %v368 = vld [vmem:[#allocation5 + $0x50] sm:$0xff]
        %v369 = vld [vmem:[#allocation5 + $0x58] sm:$0xff]
        %v370 = vld [vmem:[#allocation5 + $0x60] sm:$0xff]
        %v371 = vld [vmem:[#allocation5 + $0x68] sm:$0xff]
        %v372 = vld [vmem:[#allocation5 + $0x70] sm:$0xff]
        %v373 = vld [vmem:[#allocation5 + $0x78] sm:$0xff]
        %v374 = vld [vmem:[%s4] sm:$0x1]
        %v376 = vlaneseq
        %v377 = vshrl.u32 %v376, 7
        %v378 = vsub.s32 0, %v377
        %v379 = vrot.slane %v374, %v378
        %381 = vmatprep.subr.mxu0 0.0
        %382 = vmatpush1.msra.mxu0 %v358
        %383 = vmatprep.subr.mxu0 0.0
        %384 = vmatpush1.msra.mxu0 %v359
        %385 = vmatprep.subr.mxu0 0.0
        %386 = vmatpush1.msra.mxu0 %v360
        %387 = vmatprep.subr.mxu0 0.0
        %388 = vmatpush1.msra.mxu0 %v361
        %389 = vmatprep.subr.mxu0 0.0
        %390 = vmatpush1.msra.mxu0 %v362
        %391 = vmatprep.subr.mxu0 0.0
        %392 = vmatpush1.msra.mxu0 %v363
        %393 = vmatprep.subr.mxu0 0.0
        %394 = vmatpush1.msra.mxu0 %v364
        %395 = vmatprep.subr.mxu0 0.0
        %396 = vmatpush1.msra.mxu0 %v365
        %397 = vmatprep.subr.mxu0 0.0
        %398 = vmatpush1.msra.mxu0 %v366
        %399 = vmatprep.subr.mxu0 0.0
        %400 = vmatpush1.msra.mxu0 %v367
        %401 = vmatprep.subr.mxu0 0.0
        %402 = vmatpush1.msra.mxu0 %v368
        %403 = vmatprep.subr.mxu0 0.0
        %404 = vmatpush1.msra.mxu0 %v369
        %405 = vmatprep.subr.mxu0 0.0
        %406 = vmatpush1.msra.mxu0 %v370
        %407 = vmatprep.subr.mxu0 0.0
        %408 = vmatpush1.msra.mxu0 %v371
        %409 = vmatprep.subr.mxu0 0.0
        %410 = vmatpush1.msra.mxu0 %v372
        %411 = vmatprep.subr.mxu0 0.0
        %412 = vmatpush1.msra.mxu0 %v373
        %413 = vmatprep.subr.mxu0 0.0
        %414 = vmatpush1.msra.mxu0 0.0
        %415 = vmatprep.subr.mxu0 0.0
        %416 = vmatpush1.msra.mxu0 0.0
        %417 = vmatprep.subr.mxu0 0.0
        %418 = vmatpush1.msra.mxu0 0.0
        %419 = vmatprep.subr.mxu0 0.0
        %420 = vmatpush1.msra.mxu0 0.0
        %421 = vmatprep.subr.mxu0 0.0
        %422 = vmatpush1.msra.mxu0 0.0
        %423 = vmatprep.subr.mxu0 0.0
        %424 = vmatpush1.msra.mxu0 0.0
        %425 = vmatprep.subr.mxu0 0.0
        %426 = vmatpush1.msra.mxu0 0.0
        %427 = vmatprep.subr.mxu0 0.0
        %428 = vmatpush1.msra.mxu0 0.0
        %429 = vmatprep.subr.mxu0 0.0
        %430 = vmatpush1.msra.mxu0 0.0
        %431 = vmatprep.subr.mxu0 0.0
        %432 = vmatpush1.msra.mxu0 0.0
        %433 = vmatprep.subr.mxu0 0.0
        %434 = vmatpush1.msra.mxu0 0.0
        %435 = vmatprep.subr.mxu0 0.0
        %436 = vmatpush1.msra.mxu0 0.0
        %437 = vmatprep.subr.mxu0 0.0
        %438 = vmatpush1.msra.mxu0 0.0
        %439 = vmatprep.subr.mxu0 0.0
        %440 = vmatpush1.msra.mxu0 0.0
        %441 = vmatprep.subr.mxu0 0.0
        %442 = vmatpush1.msra.mxu0 0.0
        %443 = vmatprep.subr.mxu0 0.0
        %444 = vmatpush1.msra.mxu0 0.0
        %445 = vmatprep.mubr.f32.mxu0 0.0
        %446 = vmatmul.mubr.f32.gmra.mrb[0].mxu0 %v357
        %v447 = vpop.f32.mrb[0].mxu0
        %v448 = vadd.f32 %v379, %v447
        %v449 = vpop.f32.mrb[0].mxu0
        %450 = vdwg.mxu0
        %v451 = vmul.f32 %v448, 0.5
        %v452 = vmul.f32 %v448, 0.70710677
        %v453 = verf.f32.pop %v452
        %v454 = vadd.f32 %v453, 1.0
        %v455 = vmul.f32 %v451, %v454
        %v456 = vld [vmem:[#allocation7] sm:$0xff]
        %v457 = vld [vmem:[#allocation7 + $0x8] sm:$0xff]
        %v458 = vld [vmem:[#allocation7 + $0x10] sm:$0xff]
        %v459 = vld [vmem:[#allocation7 + $0x18] sm:$0xff]
        %v460 = vld [vmem:[#allocation7 + $0x20] sm:$0xff]
        %v461 = vld [vmem:[#allocation7 + $0x28] sm:$0xff]
        %v462 = vld [vmem:[#allocation7 + $0x30] sm:$0xff]
        %v463 = vld [vmem:[#allocation7 + $0x38] sm:$0xff]
        %v464 = vld [vmem:[#allocation7 + $0x40] sm:$0xff]
        %v465 = vld [vmem:[#allocation7 + $0x48] sm:$0xff]
        %v466 = vld [vmem:[#allocation7 + $0x50] sm:$0xff]
        %v467 = vld [vmem:[#allocation7 + $0x58] sm:$0xff]
        %v468 = vld [vmem:[#allocation7 + $0x60] sm:$0xff]
        %v469 = vld [vmem:[#allocation7 + $0x68] sm:$0xff]
        %v470 = vld [vmem:[#allocation7 + $0x70] sm:$0xff]
        %v471 = vld [vmem:[#allocation7 + $0x78] sm:$0xff]
        %v472 = vld [vmem:[%s6] sm:$0x1]
        %v474 = vlaneseq
        %v475 = vshrl.u32 %v474, 7
        %v476 = vsub.s32 0, %v475
        %v477 = vrot.slane %v472, %v476
        %479 = vmatprep.subr.mxu0 0.0
        %480 = vmatpush1.msra.mxu0 %v456
        %481 = vmatprep.subr.mxu0 0.0
        %482 = vmatpush1.msra.mxu0 %v457
        %483 = vmatprep.subr.mxu0 0.0
        %484 = vmatpush1.msra.mxu0 %v458
        %485 = vmatprep.subr.mxu0 0.0
        %486 = vmatpush1.msra.mxu0 %v459
        %487 = vmatprep.subr.mxu0 0.0
        %488 = vmatpush1.msra.mxu0 %v460
        %489 = vmatprep.subr.mxu0 0.0
        %490 = vmatpush1.msra.mxu0 %v461
        %491 = vmatprep.subr.mxu0 0.0
        %492 = vmatpush1.msra.mxu0 %v462
        %493 = vmatprep.subr.mxu0 0.0
        %494 = vmatpush1.msra.mxu0 %v463
        %495 = vmatprep.subr.mxu0 0.0
        %496 = vmatpush1.msra.mxu0 %v464
        %497 = vmatprep.subr.mxu0 0.0
        %498 = vmatpush1.msra.mxu0 %v465
        %499 = vmatprep.subr.mxu0 0.0
        %500 = vmatpush1.msra.mxu0 %v466
        %501 = vmatprep.subr.mxu0 0.0
        %502 = vmatpush1.msra.mxu0 %v467
        %503 = vmatprep.subr.mxu0 0.0
        %504 = vmatpush1.msra.mxu0 %v468
        %505 = vmatprep.subr.mxu0 0.0
        %506 = vmatpush1.msra.mxu0 %v469
        %507 = vmatprep.subr.mxu0 0.0
        %508 = vmatpush1.msra.mxu0 %v470
        %509 = vmatprep.subr.mxu0 0.0
        %510 = vmatpush1.msra.mxu0 %v471
        %511 = vmatprep.subr.mxu0 0.0
        %512 = vmatpush1.msra.mxu0 0.0
        %513 = vmatprep.subr.mxu0 0.0
        %514 = vmatpush1.msra.mxu0 0.0
        %515 = vmatprep.subr.mxu0 0.0
        %516 = vmatpush1.msra.mxu0 0.0
        %517 = vmatprep.subr.mxu0 0.0
        %518 = vmatpush1.msra.mxu0 0.0
        %519 = vmatprep.subr.mxu0 0.0
        %520 = vmatpush1.msra.mxu0 0.0
        %521 = vmatprep.subr.mxu0 0.0
        %522 = vmatpush1.msra.mxu0 0.0
        %523 = vmatprep.subr.mxu0 0.0
        %524 = vmatpush1.msra.mxu0 0.0
        %525 = vmatprep.subr.mxu0 0.0
        %526 = vmatpush1.msra.mxu0 0.0
        %527 = vmatprep.subr.mxu0 0.0
        %528 = vmatpush1.msra.mxu0 0.0
        %529 = vmatprep.subr.mxu0 0.0
        %530 = vmatpush1.msra.mxu0 0.0
        %531 = vmatprep.subr.mxu0 0.0
        %532 = vmatpush1.msra.mxu0 0.0
        %533 = vmatprep.subr.mxu0 0.0
        %534 = vmatpush1.msra.mxu0 0.0
        %535 = vmatprep.subr.mxu0 0.0
        %536 = vmatpush1.msra.mxu0 0.0
        %537 = vmatprep.subr.mxu0 0.0
        %538 = vmatpush1.msra.mxu0 0.0
        %539 = vmatprep.subr.mxu0 0.0
        %540 = vmatpush1.msra.mxu0 0.0
        %541 = vmatprep.subr.mxu0 0.0
        %542 = vmatpush1.msra.mxu0 0.0
        %543 = vmatprep.mubr.f32.mxu0 0.0
        %544 = vmatmul.mubr.f32.gmra.mrb[0].mxu0 %v455
        %v545 = vpop.f32.mrb[0].mxu0
        %v546 = vadd.f32 %v477, %v545
        %v547 = vpop.f32.mrb[0].mxu0
        %548 = vdwg.mxu0
        %549 = vst [vmem:[%s322] sm:$0xff] %v546
        %s550 = sand.u32 %s185, 1
        %s551 = scalar_lea.sflag [#allocation4], %s550
        %s552 = sand.u32 %s185, 1
        %s553 = smul.addr %s552, 8
        %s554 = scalar_lea.vmem [#allocation8], %s553
        // Predicated region
        $region61: #{tpu_custom_call.1} parent=47 // pred_check
          %p555 = pneg %p195
        $region62: #{tpu_custom_call.1} parent=47 // pred_check_branch
          %557 = sbr.rel (%p555) target = $region64
        $region63: #{tpu_custom_call.1} parent=47 // pred_region
          %s559 = ssub.s32 128, 128
          %560 = vsyncadd %s551, %s559
          %s561 = smul.addr %s25, 128
          %s562 = scalar_lea.hbm %s7, %s561
          %s564 = sshll.u32 %s554, 4
          %s565 = int_to_ptr.vmem [resolvable:$true] %s564
          %567 = dma.vmem_to_hbm [thread:$0]  %s565, 128, %s562, %s551
        $region64: #{tpu_custom_call.1} parent=47 // pred_fallthru
          _
      $region48: #{tpu_custom_call.1} parent=5 // pred_fallthru
        _
      %p568 = scmp.le.s32.totalorder 2, %s20
      // Predicated region
      $region65: #{tpu_custom_call.1} parent=5 // pred_check
        %p569 = pneg %p568
      $region66: #{tpu_custom_call.1} parent=5 // pred_check_branch
        %571 = sbr.rel (%p569) target = $region68
      $region67: #{tpu_custom_call.1} parent=5 // pred_region
        %s572 = ssub.s32 %s20, 2
        // Predicated region
        $region69: #{tpu_custom_call.1} parent=67 // pred_check
          %p573 = pneg %p201
        $region70: #{tpu_custom_call.1} parent=67 // pred_check_branch
          %575 = sbr.rel (%p573) target = $region72
        $region71: #{tpu_custom_call.1} parent=67 // pred_region
          %s576 = sand.u32 %s186, 1
          %s577 = scalar_lea.sflag [#allocation4], %s576
          %s578 = sand.u32 %s186, 1
          %s579 = smul.addr %s578, 8
          %s580 = scalar_lea.vmem [#allocation8], %s579
          %581 = dma.done %s577, 128
        $region72: #{tpu_custom_call.1} parent=67 // pred_fallthru
          _
      $region68: #{tpu_custom_call.1} parent=5 // pred_fallthru
        _
    $region6: #{tpu_custom_call.1} parent=1 // loop_footer
      %s24 = sadd.s32 1, %s20
    $region7: #{tpu_custom_call.1} parent=1 // loop_footer_branch
      %19 = sbr.rel target = $region3
    $region8: #{tpu_custom_call.1} parent=1 // loop_exit
      _
    %582 = vsyncpa [#allocation3], 1
    %s583 = scalar_lea.sflag [#allocation3], 1
    %584 = vsyncpa %s583, 1
    %585 = vsyncpa [#allocation6], 1
    %586 = vsyncpa [#allocation4], 1
    %s587 = scalar_lea.sflag [#allocation4], 1
    %588 = vsyncpa %s587, 1

</llo_original>
